<compile_context>
chip_gen: v7x
topology: tpu7x:2x2x1
jax: 0.10.0
libtpu: 0.0.40
codegen_flags: <defaults>
</compile_context>

<pallas_src>
import functools

import jax
import jax.numpy as jnp
from jax import lax
from jax.experimental import pallas as pl
from jax.experimental.pallas import tpu as pltpu

GAMMA = 12.0  # TransE margin


def _round_up(x, m):
    return ((x + m - 1) // m) * m


def _make_kernel(TB, NR, gamma):
    def kernel(head_ids, tail_ids,        # scalar-prefetch SMEM refs, (B_pad,) int32
               rel_ids_ref,               # (TB, 1) int32 VMEM tile (relation ids, sublane-major)
               rel_table_ref,             # (NR, D) VMEM, resident across the whole grid
               ent_hbm,                   # (NE, D) HBM ref (memory_space=pl.ANY)
               out_ref,                   # (1, TB) float32, lane-dense scores
               head_buf, tail_buf, sem):  # scratch: (TB, D) x2 VMEM, DMA sems (2,)
        base = pl.program_id(0) * TB

        # ---- issue all entity-row gather DMAs for this tile (2*TB concurrently in flight) ----
        @pl.loop(0, TB)
        def _issue(j):
            h = head_ids[base + j]
            t = tail_ids[base + j]
            pltpu.make_async_copy(ent_hbm.at[h], head_buf.at[j], sem.at[0]).start()
            pltpu.make_async_copy(ent_hbm.at[t], tail_buf.at[j], sem.at[1]).start()

        # ---- relation gather from the VMEM-resident table via one-hot MXU matmul ----
        # (pure compute: overlaps with the outstanding entity-row DMAs)
        rid = rel_ids_ref[...]                                            # (TB, 1) int32
        sel = (rid == lax.broadcasted_iota(jnp.int32, (TB, NR), 1))       # (TB, NR) one-hot
        rel = jnp.dot(sel.astype(jnp.float32),
                      rel_table_ref[...].astype(jnp.float32),
                      preferred_element_type=jnp.float32)                 # (TB, D)

        # ---- drain the gather semaphores (one wait per issued row copy; same-size descriptors) ----
        @pl.loop(0, TB)
        def _drain(j):
            pltpu.make_async_copy(ent_hbm.at[0], head_buf.at[0], sem.at[0]).wait()
            pltpu.make_async_copy(ent_hbm.at[0], tail_buf.at[0], sem.at[1]).wait()

        # ---- TransE score on the full (TB, D) slab, lane-dense store ----
        h = head_buf[...].astype(jnp.float32)
        t = tail_buf[...].astype(jnp.float32)
        out_ref[0, :] = gamma - jnp.sum(jnp.abs(h + rel - t), axis=-1)

    return kernel


@functools.partial(jax.jit, static_argnames=("tile", "gamma"))
def relation_learning_forward(sample, entity_embedding, relation_embedding,
                              *, tile=512, gamma=GAMMA):
    """Pallas equivalent of RelationLearningModel.forward (TransE score)."""
    B = sample.shape[0]
    NE, D = entity_embedding.shape
    NR, Dr = relation_embedding.shape
    assert D == Dr

    TB = min(tile, _round_up(B, 128))       # lane-dense tile of triples per grid step
    B_pad = _round_up(B, TB)
    num_tiles = B_pad // TB

    ids = sample.astype(jnp.int32)
    if B_pad != B:
        ids = jnp.pad(ids, ((0, B_pad - B), (0, 0)))   # padded rows gather row 0; discarded below
    head_ids = ids[:, 0]                               # (B_pad,)  -> SMEM scalar prefetch
    tail_ids = ids[:, 2]                               # (B_pad,)  -> SMEM scalar prefetch
    rel_ids_col = ids[:, 1:2]                          # (B_pad,1) -> VMEM, sublane-major ids

    grid_spec = pltpu.PrefetchScalarGridSpec(
        num_scalar_prefetch=2,                         # head_ids, tail_ids
        grid=(num_tiles,),
        in_specs=[
            pl.BlockSpec((TB, 1), lambda i, hi, ti: (i, 0)),    # relation ids for this tile
            pl.BlockSpec((NR, D), lambda i, hi, ti: (0, 0)),    # relation table pinned in VMEM
            pl.BlockSpec(memory_space=pl.ANY),                  # entity table stays in HBM
        ],
        out_specs=pl.BlockSpec((1, TB), lambda i, hi, ti: (i, 0)),
        scratch_shapes=[
            pltpu.VMEM((TB, D), entity_embedding.dtype),        # gathered head rows
            pltpu.VMEM((TB, D), entity_embedding.dtype),        # gathered tail rows
            pltpu.SemaphoreType.DMA((2,)),                      # head / tail gather streams
        ],
    )

    out = pl.pallas_call(
        _make_kernel(TB, NR, float(gamma)),
        out_shape=jax.ShapeDtypeStruct((num_tiles, TB), jnp.float32),
        grid_spec=grid_spec,
        compiler_params=pltpu.CompilerParams(
            dimension_semantics=("parallel",)),        # independent tiles -> both TCs on v7x
    )(head_ids, tail_ids, rel_ids_col, relation_embedding, entity_embedding)

    return out.reshape(B_pad)[:B]                      # (B,)


def reference_forward(sample, entity_embedding, relation_embedding, gamma=GAMMA):
    head = entity_embedding[sample[:, 0]]
    relation = relation_embedding[sample[:, 1]]
    tail = entity_embedding[sample[:, 2]]
    return gamma - jnp.sum(jnp.abs(head + relation - tail), axis=-1)


# TODO(synk): `score` is abstract in the PyTorch base class; TransE (gamma - L1) is used as the
# concrete score.  `loss` (logsigmoid mean over pos/neg samples) is glue and left in plain JAX.

if __name__ == "__main__":
    # Config implied by __init__: entity_num, relation_num, entity_embedding_dim.
    entity_num = 64
    relation_num = 8
    hidden_dim = 32
    batch = 8

    key = jax.random.PRNGKey(0)
    k_ent, k_rel, k_h, k_r, k_t = jax.random.split(key, 5)

    entity_embedding = jax.random.uniform(
        k_ent, (entity_num, hidden_dim), jnp.float32, minval=-0.5, maxval=0.5)
    relation_embedding = jax.random.uniform(
        k_rel, (relation_num, hidden_dim), jnp.float32, minval=-0.5, maxval=0.5)

    sample = jnp.stack(
        [
            jax.random.randint(k_h, (batch,), 0, entity_num),
            jax.random.randint(k_r, (batch,), 0, relation_num),
            jax.random.randint(k_t, (batch,), 0, entity_num),
        ],
        axis=1,
    ).astype(jnp.int32)  # (batch, 3)

    score = relation_learning_forward(sample, entity_embedding, relation_embedding)
    score = jax.block_until_ready(score)

    ref = reference_forward(sample, entity_embedding, relation_embedding)
    assert score.shape == (batch,)
    assert jnp.allclose(score, ref, atol=1e-4, rtol=1e-4), (score, ref)

    print("KERNEL_OK")
</pallas_src>

<mosaic_0001>
module attributes {stable_mosaic.version = 11 : i64} {
  func.func @kernel(%arg0: i32, %arg1: memref<128xi32, #tpu.memory_space<smem>>, %arg2: memref<128xi32, #tpu.memory_space<smem>>, %arg3: memref<128x1xi32, #tpu.memory_space<vmem>>, %arg4: memref<8x32xf32, #tpu.memory_space<vmem>>, %arg5: memref<64x32xf32, #tpu.memory_space<any>>, %arg6: memref<1x128xf32, #tpu.memory_space<vmem>>, %arg7: memref<128x32xf32, #tpu.memory_space<vmem>>, %arg8: memref<128x32xf32, #tpu.memory_space<vmem>>, %arg9: memref<2x!tpu.dma_semaphore, #tpu.memory_space<semaphore_mem>>) attributes {dimension_semantics = [#tpu.dimension_semantics<parallel>], iteration_bounds = array<i64: 1>, scalar_prefetch = 2 : i64, scratch_operands = 3 : i64, tpu.core_type = #tpu.core_type<tc>, window_params = [{transform_indices = @transform_0, window_bounds = array<i64: 128, 1>}, {pipeline_mode = #tpu.pipeline_mode<synchronous>, transform_indices = @transform_1, window_bounds = array<i64: 8, 32>}, {}, {transform_indices = @transform_3, window_bounds = array<i64: 1, 128>}]} {
    %c128_i32 = arith.constant 128 : i32
    %0 = arith.muli %arg0, %c128_i32 : i32
    %c0_i32 = arith.constant 0 : i32
    %c128_i32_0 = arith.constant 128 : i32
    %1 = arith.addi %c0_i32, %c128_i32_0 : i32
    %c1_i32 = arith.constant 1 : i32
    scf.for %arg10 = %c0_i32 to %1 step %c1_i32  : i32 {
      %c1_i32_16 = arith.constant 1 : i32
      %22 = arith.muli %arg10, %c1_i32_16 : i32
      %c0_i32_17 = arith.constant 0 : i32
      %23 = arith.addi %c0_i32_17, %22 : i32
      %24 = arith.addi %0, %23 : i32
      %25 = arith.index_cast %24 : i32 to index
      %26 = memref.load %arg1[%25] : memref<128xi32, #tpu.memory_space<smem>>
      %27 = arith.addi %0, %23 : i32
      %28 = arith.index_cast %27 : i32 to index
      %29 = memref.load %arg2[%28] : memref<128xi32, #tpu.memory_space<smem>>
      %c0_i32_18 = arith.constant 0 : i32
      %c0_i32_19 = arith.constant 0 : i32
      %30 = tpu.memref_slice %arg5[%26, %c0_i32_19] : memref<64x32xf32, #tpu.memory_space<any>> -> memref<1x32xf32, #tpu.memory_space<any>>
      %31 = tpu.memref_squeeze %30 : memref<1x32xf32, #tpu.memory_space<any>> -> memref<32xf32, #tpu.memory_space<any>>
      %c0_i32_20 = arith.constant 0 : i32
      %32 = tpu.memref_slice %arg7[%23, %c0_i32_20] : memref<128x32xf32, #tpu.memory_space<vmem>> -> memref<1x32xf32, #tpu.memory_space<vmem>>
      %33 = tpu.memref_squeeze %32 : memref<1x32xf32, #tpu.memory_space<vmem>> -> memref<32xf32, #tpu.memory_space<vmem>>
      %34 = tpu.memref_slice %arg9[%c0_i32_18] : memref<2x!tpu.dma_semaphore, #tpu.memory_space<semaphore_mem>> -> memref<1x!tpu.dma_semaphore, #tpu.memory_space<semaphore_mem>>
      %35 = tpu.memref_squeeze %34 : memref<1x!tpu.dma_semaphore, #tpu.memory_space<semaphore_mem>> -> memref<!tpu.dma_semaphore, #tpu.memory_space<semaphore_mem>>
      tpu.enqueue_dma source(%31 : memref<32xf32, #tpu.memory_space<any>>) target(%33 : memref<32xf32, #tpu.memory_space<vmem>>) target_semaphore(%35 : memref<!tpu.dma_semaphore, #tpu.memory_space<semaphore_mem>>)
      %c1_i32_21 = arith.constant 1 : i32
      %c0_i32_22 = arith.constant 0 : i32
      %36 = tpu.memref_slice %arg5[%29, %c0_i32_22] : memref<64x32xf32, #tpu.memory_space<any>> -> memref<1x32xf32, #tpu.memory_space<any>>
      %37 = tpu.memref_squeeze %36 : memref<1x32xf32, #tpu.memory_space<any>> -> memref<32xf32, #tpu.memory_space<any>>
      %c0_i32_23 = arith.constant 0 : i32
      %38 = tpu.memref_slice %arg8[%23, %c0_i32_23] : memref<128x32xf32, #tpu.memory_space<vmem>> -> memref<1x32xf32, #tpu.memory_space<vmem>>
      %39 = tpu.memref_squeeze %38 : memref<1x32xf32, #tpu.memory_space<vmem>> -> memref<32xf32, #tpu.memory_space<vmem>>
      %40 = tpu.memref_slice %arg9[%c1_i32_21] : memref<2x!tpu.dma_semaphore, #tpu.memory_space<semaphore_mem>> -> memref<1x!tpu.dma_semaphore, #tpu.memory_space<semaphore_mem>>
      %41 = tpu.memref_squeeze %40 : memref<1x!tpu.dma_semaphore, #tpu.memory_space<semaphore_mem>> -> memref<!tpu.dma_semaphore, #tpu.memory_space<semaphore_mem>>
      tpu.enqueue_dma source(%37 : memref<32xf32, #tpu.memory_space<any>>) target(%39 : memref<32xf32, #tpu.memory_space<vmem>>) target_semaphore(%41 : memref<!tpu.dma_semaphore, #tpu.memory_space<semaphore_mem>>)
    }
    %c128_i32_1 = arith.constant 128 : i32
    %c0 = arith.constant 0 : index
    %c0_2 = arith.constant 0 : index
    %2 = vector.load %arg3[%c0, %c0_2] : memref<128x1xi32, #tpu.memory_space<vmem>>, vector<128x1xi32>
    %3 = tpu.iota {dimensions = array<i32: 1>} : vector<128x8xi32>
    %4 = vector.broadcast %2 : vector<128x1xi32> to vector<128x8xi32>
    %5 = arith.cmpi eq, %4, %3 : vector<128x8xi32>
    %6 = arith.extui %5 : vector<128x8xi1> to vector<128x8xi32>
    %7 = arith.sitofp %6 : vector<128x8xi32> to vector<128x8xf32>
    %c0_3 = arith.constant 0 : index
    %c0_4 = arith.constant 0 : index
    %8 = vector.load %arg4[%c0_3, %c0_4] : memref<8x32xf32, #tpu.memory_space<vmem>>, vector<8x32xf32>
    %cst = arith.constant dense<0.000000e+00> : vector<128x32xf32>
    %9 = tpu.matmul %7, %8, %cst {dimension_numbers = #tpu.dot_dimension_numbers<[1], [0], [0], [1], [0, 0, 1, 1], [], []>} : vector<128x8xf32>, vector<8x32xf32>, vector<128x32xf32> -> vector<128x32xf32>
    %c0_i32_5 = arith.constant 0 : i32
    %c128_i32_6 = arith.constant 128 : i32
    %10 = arith.addi %c0_i32_5, %c128_i32_6 : i32
    %c1_i32_7 = arith.constant 1 : i32
    scf.for %arg10 = %c0_i32_5 to %10 step %c1_i32_7  : i32 {
      %c0_i32_16 = arith.constant 0 : i32
      %c0_i32_17 = arith.constant 0 : i32
      %c0_i32_18 = arith.constant 0 : i32
      %c0_i32_19 = arith.constant 0 : i32
      %22 = tpu.memref_slice %arg5[%c0_i32_16, %c0_i32_19] : memref<64x32xf32, #tpu.memory_space<any>> -> memref<1x32xf32, #tpu.memory_space<any>>
      %23 = tpu.memref_squeeze %22 : memref<1x32xf32, #tpu.memory_space<any>> -> memref<32xf32, #tpu.memory_space<any>>
      %c0_i32_20 = arith.constant 0 : i32
      %24 = tpu.memref_slice %arg7[%c0_i32_17, %c0_i32_20] : memref<128x32xf32, #tpu.memory_space<vmem>> -> memref<1x32xf32, #tpu.memory_space<vmem>>
      %25 = tpu.memref_squeeze %24 : memref<1x32xf32, #tpu.memory_space<vmem>> -> memref<32xf32, #tpu.memory_space<vmem>>
      %26 = tpu.memref_slice %arg9[%c0_i32_18] : memref<2x!tpu.dma_semaphore, #tpu.memory_space<semaphore_mem>> -> memref<1x!tpu.dma_semaphore, #tpu.memory_space<semaphore_mem>>
      %27 = tpu.memref_squeeze %26 : memref<1x!tpu.dma_semaphore, #tpu.memory_space<semaphore_mem>> -> memref<!tpu.dma_semaphore, #tpu.memory_space<semaphore_mem>>
      tpu.wait_dma2 semaphore(%27 : memref<!tpu.dma_semaphore, #tpu.memory_space<semaphore_mem>>) src(%23 : memref<32xf32, #tpu.memory_space<any>>) dst(%25 : memref<32xf32, #tpu.memory_space<vmem>>)
      %c0_i32_21 = arith.constant 0 : i32
      %c0_i32_22 = arith.constant 0 : i32
      %c1_i32_23 = arith.constant 1 : i32
      %c0_i32_24 = arith.constant 0 : i32
      %28 = tpu.memref_slice %arg5[%c0_i32_21, %c0_i32_24] : memref<64x32xf32, #tpu.memory_space<any>> -> memref<1x32xf32, #tpu.memory_space<any>>
      %29 = tpu.memref_squeeze %28 : memref<1x32xf32, #tpu.memory_space<any>> -> memref<32xf32, #tpu.memory_space<any>>
      %c0_i32_25 = arith.constant 0 : i32
      %30 = tpu.memref_slice %arg8[%c0_i32_22, %c0_i32_25] : memref<128x32xf32, #tpu.memory_space<vmem>> -> memref<1x32xf32, #tpu.memory_space<vmem>>
      %31 = tpu.memref_squeeze %30 : memref<1x32xf32, #tpu.memory_space<vmem>> -> memref<32xf32, #tpu.memory_space<vmem>>
      %32 = tpu.memref_slice %arg9[%c1_i32_23] : memref<2x!tpu.dma_semaphore, #tpu.memory_space<semaphore_mem>> -> memref<1x!tpu.dma_semaphore, #tpu.memory_space<semaphore_mem>>
      %33 = tpu.memref_squeeze %32 : memref<1x!tpu.dma_semaphore, #tpu.memory_space<semaphore_mem>> -> memref<!tpu.dma_semaphore, #tpu.memory_space<semaphore_mem>>
      tpu.wait_dma2 semaphore(%33 : memref<!tpu.dma_semaphore, #tpu.memory_space<semaphore_mem>>) src(%29 : memref<32xf32, #tpu.memory_space<any>>) dst(%31 : memref<32xf32, #tpu.memory_space<vmem>>)
    }
    %c0_8 = arith.constant 0 : index
    %c0_9 = arith.constant 0 : index
    %11 = vector.load %arg7[%c0_8, %c0_9] : memref<128x32xf32, #tpu.memory_space<vmem>>, vector<128x32xf32>
    %c0_10 = arith.constant 0 : index
    %c0_11 = arith.constant 0 : index
    %12 = vector.load %arg8[%c0_10, %c0_11] : memref<128x32xf32, #tpu.memory_space<vmem>>, vector<128x32xf32>
    %13 = arith.addf %11, %9 : vector<128x32xf32>
    %14 = arith.subf %13, %12 : vector<128x32xf32>
    %15 = math.absf %14 : vector<128x32xf32>
    %cst_12 = arith.constant dense<0.000000e+00> : vector<128xf32>
    %16 = vector.multi_reduction <add>, %15, %cst_12 [1] : vector<128x32xf32> to vector<128xf32>
    %cst_13 = arith.constant 1.200000e+01 : f32
    %17 = vector.broadcast %cst_13 : f32 to vector<128xf32>
    %18 = arith.subf %17, %16 : vector<128xf32>
    %c0_14 = arith.constant 0 : index
    %c0_15 = arith.constant 0 : index
    %19 = vector.load %arg6[%c0_14, %c0_15] : memref<1x128xf32, #tpu.memory_space<vmem>>, vector<1x128xf32>
    %20 = vector.shape_cast %19 : vector<1x128xf32> to vector<128xf32>
    %21 = vector.shape_cast %18 : vector<128xf32> to vector<1x128xf32>
    tpu.vector_store %arg6[%c0_14, %c0_15], %21 {strides = array<i32>} : memref<1x128xf32, #tpu.memory_space<vmem>>, vector<1x128xf32>,
    return
  }
  func.func @transform_0(%arg0: i32, %arg1: memref<128xi32, #tpu.memory_space<smem>>, %arg2: memref<128xi32, #tpu.memory_space<smem>>) -> (i32, i32) {
    %c0_i32 = arith.constant 0 : i32
    %c0_i32_0 = arith.constant 0 : i32
    return %arg0, %c0_i32 : i32, i32
  }
  func.func @transform_1(%arg0: i32, %arg1: memref<128xi32, #tpu.memory_space<smem>>, %arg2: memref<128xi32, #tpu.memory_space<smem>>) -> (i32, i32) {
    %c0_i32 = arith.constant 0 : i32
    %c0_i32_0 = arith.constant 0 : i32
    %c0_i32_1 = arith.constant 0 : i32
    return %c0_i32, %c0_i32_0 : i32, i32
  }
  func.func @transform_3(%arg0: i32, %arg1: memref<128xi32, #tpu.memory_space<smem>>, %arg2: memref<128xi32, #tpu.memory_space<smem>>) -> (i32, i32) {
    %c0_i32 = arith.constant 0 : i32
    %c0_i32_0 = arith.constant 0 : i32
    return %arg0, %c0_i32 : i32, i32
  }
}

</mosaic_0001>

<llo_original>
// kernel: relation_learning_forward.1
$region0: #{relation_learning_forward.1}
  #allocation0 [shape = 'u32[]', space=smem, size = 0x4, offset = 0x4, fixed_abs, tag = 'smem constant byte address 0x4 - core index']
  #allocation1 [shape = 'u32[144,128]{1,0:T(1,128)}', space=vmem, size = 0x12000, scoped, tag = 'internal scratch']
  #allocation2 [shape = 'f32[128,32]{1,0:T(8,128)}', space=vmem, size = 0x10000, scoped, tag = 'scratch operand']
  #allocation3 [shape = 'f32[128,32]{1,0:T(8,128)}', space=vmem, size = 0x10000, scoped, tag = 'scratch operand']
  #allocation4 [shape = 's32[2]{0}', space=sflag, size = 0x8, scoped, tag = 'scratch operand']
  #allocation5 [shape = 's32[1]{0}', space=sflag, size = 0x4, scoped, tag = 'scoped memory for relation_learning_forward.1']
  #allocation6 [shape = 'u8[512]{0}', space=smem, size = 0x200, scoped, tag = 'prefetched SMEM operand 0']
  #allocation7 [shape = 'u8[512]{0}', space=smem, size = 0x200, scoped, tag = 'prefetched SMEM operand 1']
  #allocation8 [shape = 's32[]', space=sflag, size = 0x4, offset = 0, fixed_abs, tag = 'sflag constant byte address 0x0 - dummy sync flag']
  #allocation9 [shape = 's32[]', space=sflag, size = 0x4, offset = 0, fixed_abs, tag = 'sflag constant byte address 0x0 - dummy sync flag']
  %s0 = inlined_call_operand.vmem [shape: s32[128], index: 0, kind: input, shape index: {}]
  %s1 = inlined_call_operand.vmem [shape: s32[128], index: 1, kind: input, shape index: {}]
  %s2 = inlined_call_operand.vmem [shape: s32[128,1], index: 2, kind: input, shape index: {}]
  %s3 = inlined_call_operand.vmem [shape: f32[8,32], index: 3, kind: input, shape index: {}]
  %s4 = inlined_call_operand.vmem [shape: f32[64,32], index: 4, kind: input, shape index: {}]
  %s5 = inlined_call_operand.vmem [shape: f32[1,128], index: 5, kind: output, shape index: {}]
  %s6 = sld [smem:[#allocation0]]
  $region92: #{relation_learning_forward.1} parent=0
    _
  %s8 = ssub.s32 1, %s6
  %s9 = scalar_select 0, %s8, %s6
  %s10 = sshll.u32 %s0, 4
  %s11 = int_to_ptr.vmem [resolvable:$true] %s10
  %13 = dma.vmem_to_smem %s11, 16, [#allocation6], [#allocation5]
  %s14 = sshll.u32 %s1, 4
  %s15 = int_to_ptr.vmem [resolvable:$true] %s14
  %17 = dma.vmem_to_smem %s15, 16, [#allocation7], [#allocation5]
  %18 = dma.done [#allocation5], 32
  %19 = sfence
  // Predicated region
  $region2: #{relation_learning_forward.1} parent=0 // pred_check
    _
  $region3: #{relation_learning_forward.1} parent=0 // pred_check_branch
    %21 = sbr.rel (0) target = $region5
  $region4: #{relation_learning_forward.1} parent=0 // pred_region
    _
  $region5: #{relation_learning_forward.1} parent=0 // pred_fallthru
    _
  // Predicated region
  $region6: #{relation_learning_forward.1} parent=0 // pred_check
    _
  $region7: #{relation_learning_forward.1} parent=0 // pred_check_branch
    %23 = sbr.rel (0) target = $region9
  $region8: #{relation_learning_forward.1} parent=0 // pred_region
    _
  $region9: #{relation_learning_forward.1} parent=0 // pred_fallthru
    _
  %s24 = smul.u32 0, 128
  loop: start=0, step=1, limit=128
  $region10: #{relation_learning_forward.1} parent=0 // loop_pre_header
    _
  $region11: #{relation_learning_forward.1} parent=0 // loop_header
    %s26 = sphi 0, %s30
    %p27 = scmp.ge.s32.totalorder %s26, 128
  $region12: #{relation_learning_forward.1} parent=0 // loop_header_branch
    %29 = sbr.rel (%p27) target = $region16
  $region13: #{relation_learning_forward.1} parent=0 // loop_body
    %s31 = sadd.s32 %s24, %s26
    %s32 = sld [smem:[#allocation6 + %s31]]
    %s33 = sld [smem:[#allocation7 + %s31]]
    %s34 = scalar_lea.vmem %s4, %s32
    %s35 = scalar_lea.vmem [#allocation2], %s26
    %p37 = scmp.lt.u32.totalorder 1, 8
    %p38 = pneg %p37
    // Predicated region
    $region17: #{relation_learning_forward.1} parent=13 // pred_check
      _
    $region18: #{relation_learning_forward.1} parent=13 // pred_check_branch
      %40 = sbr.rel (%p37) target = $region20
    $region19: #{relation_learning_forward.1} parent=13 // pred_region
      %s55 = sand.u32 1, 7
      %p56 = scmp.eq.s32.totalorder %s55, 0
      %p57 = pneg %p56
      // Predicated region
      $region32: #{relation_learning_forward.1} parent=19 // pred_check
        _
      $region33: #{relation_learning_forward.1} parent=19 // pred_check_branch
        %59 = sbr.rel (%p56) target = $region35
      $region34: #{relation_learning_forward.1} parent=19 // pred_region
        %s60 = sand.u32 1, 7
        %s61 = ssub.s32 1, %s60
        %s62 = scalar_lea.vmem %s34, %s61
        %s63 = ssub.s32 1, %s60
        %s64 = scalar_lea.vmem %s35, %s63 [#allocation2]
        %s65 = sshllo.u32 0, %s60
        loop: start=0, step=1, limit=1
        $region36: #{relation_learning_forward.1} parent=34 // loop_pre_header
          _
        $region37: #{relation_learning_forward.1} parent=34 // loop_header
          %s67 = sphi 0, %s71
          %p68 = scmp.ge.s32.totalorder %s67, 1
          %s72 = sphi %s62, %s62
          %s73 = sphi %s64, %s64
        $region38: #{relation_learning_forward.1} parent=34 // loop_header_branch
          %70 = sbr.rel (%p68) target = $region42
        $region39: #{relation_learning_forward.1} parent=34 // loop_body
          %v74 = vld [vmem:[%s72] sm:%s65]
          %75 = vst [vmem:[%s73] sm:%s65] %v74
        $region40: #{relation_learning_forward.1} parent=34 // loop_footer
          %s71 = sadd.s32 1, %s67
        $region41: #{relation_learning_forward.1} parent=34 // loop_footer_branch
          %66 = sbr.rel target = $region37
        $region42: #{relation_learning_forward.1} parent=34 // loop_exit
          _
      $region35: #{relation_learning_forward.1} parent=19 // pred_fallthru
        _
    $region20: #{relation_learning_forward.1} parent=13 // pred_fallthru
      _
    // Predicated region
    $region21: #{relation_learning_forward.1} parent=13 // pred_check
      %p41 = pneg %p37
    $region22: #{relation_learning_forward.1} parent=13 // pred_check_branch
      %43 = sbr.rel (%p41) target = $region24
    $region23: #{relation_learning_forward.1} parent=13 // pred_region
      %s44 = sshllo.u32 0, 1
      loop: start=0, step=1, limit=1
      $region25: #{relation_learning_forward.1} parent=23 // loop_pre_header
        _
      $region26: #{relation_learning_forward.1} parent=23 // loop_header
        %s46 = sphi 0, %s50
        %p47 = scmp.ge.s32.totalorder %s46, 1
        %s51 = sphi %s34, %s34
        %s52 = sphi %s35, %s35
      $region27: #{relation_learning_forward.1} parent=23 // loop_header_branch
        %49 = sbr.rel (%p47) target = $region31
      $region28: #{relation_learning_forward.1} parent=23 // loop_body
        %v53 = vld [vmem:[%s51] sm:%s44]
        %54 = vst [vmem:[%s52] sm:%s44] %v53
      $region29: #{relation_learning_forward.1} parent=23 // loop_footer
        %s50 = sadd.s32 1, %s46
      $region30: #{relation_learning_forward.1} parent=23 // loop_footer_branch
        %45 = sbr.rel target = $region26
      $region31: #{relation_learning_forward.1} parent=23 // loop_exit
        _
    $region24: #{relation_learning_forward.1} parent=13 // pred_fallthru
      _
    // Predicated region
    $region43: #{relation_learning_forward.1} parent=13 // pred_check
      _
    $region44: #{relation_learning_forward.1} parent=13 // pred_check_branch
      %78 = sbr.rel (0) target = $region46
    $region45: #{relation_learning_forward.1} parent=13 // pred_region
      %79 = vsyncadd [#allocation4], 16
    $region46: #{relation_learning_forward.1} parent=13 // pred_fallthru
      _
    %s80 = scalar_lea.vmem %s4, %s33
    %s81 = scalar_lea.vmem [#allocation3], %s26
    %s82 = scalar_lea.sflag [#allocation4], 1
    %p84 = scmp.lt.u32.totalorder 1, 8
    %p85 = pneg %p84
    // Predicated region
    $region47: #{relation_learning_forward.1} parent=13 // pred_check
      _
    $region48: #{relation_learning_forward.1} parent=13 // pred_check_branch
      %87 = sbr.rel (%p84) target = $region50
    $region49: #{relation_learning_forward.1} parent=13 // pred_region
      %s102 = sand.u32 1, 7
      %p103 = scmp.eq.s32.totalorder %s102, 0
      %p104 = pneg %p103
      // Predicated region
      $region62: #{relation_learning_forward.1} parent=49 // pred_check
        _
      $region63: #{relation_learning_forward.1} parent=49 // pred_check_branch
        %106 = sbr.rel (%p103) target = $region65
      $region64: #{relation_learning_forward.1} parent=49 // pred_region
        %s107 = sand.u32 1, 7
        %s108 = ssub.s32 1, %s107
        %s109 = scalar_lea.vmem %s80, %s108
        %s110 = ssub.s32 1, %s107
        %s111 = scalar_lea.vmem %s81, %s110 [#allocation3]
        %s112 = sshllo.u32 0, %s107
        loop: start=0, step=1, limit=1
        $region66: #{relation_learning_forward.1} parent=64 // loop_pre_header
          _
        $region67: #{relation_learning_forward.1} parent=64 // loop_header
          %s114 = sphi 0, %s118
          %p115 = scmp.ge.s32.totalorder %s114, 1
          %s119 = sphi %s109, %s109
          %s120 = sphi %s111, %s111
        $region68: #{relation_learning_forward.1} parent=64 // loop_header_branch
          %117 = sbr.rel (%p115) target = $region72
        $region69: #{relation_learning_forward.1} parent=64 // loop_body
          %v121 = vld [vmem:[%s119] sm:%s112]
          %122 = vst [vmem:[%s120] sm:%s112] %v121
        $region70: #{relation_learning_forward.1} parent=64 // loop_footer
          %s118 = sadd.s32 1, %s114
        $region71: #{relation_learning_forward.1} parent=64 // loop_footer_branch
          %113 = sbr.rel target = $region67
        $region72: #{relation_learning_forward.1} parent=64 // loop_exit
          _
      $region65: #{relation_learning_forward.1} parent=49 // pred_fallthru
        _
    $region50: #{relation_learning_forward.1} parent=13 // pred_fallthru
      _
    // Predicated region
    $region51: #{relation_learning_forward.1} parent=13 // pred_check
      %p88 = pneg %p84
    $region52: #{relation_learning_forward.1} parent=13 // pred_check_branch
      %90 = sbr.rel (%p88) target = $region54
    $region53: #{relation_learning_forward.1} parent=13 // pred_region
      %s91 = sshllo.u32 0, 1
      loop: start=0, step=1, limit=1
      $region55: #{relation_learning_forward.1} parent=53 // loop_pre_header
        _
      $region56: #{relation_learning_forward.1} parent=53 // loop_header
        %s93 = sphi 0, %s97
        %p94 = scmp.ge.s32.totalorder %s93, 1
        %s98 = sphi %s80, %s80
        %s99 = sphi %s81, %s81
      $region57: #{relation_learning_forward.1} parent=53 // loop_header_branch
        %96 = sbr.rel (%p94) target = $region61
      $region58: #{relation_learning_forward.1} parent=53 // loop_body
        %v100 = vld [vmem:[%s98] sm:%s91]
        %101 = vst [vmem:[%s99] sm:%s91] %v100
      $region59: #{relation_learning_forward.1} parent=53 // loop_footer
        %s97 = sadd.s32 1, %s93
      $region60: #{relation_learning_forward.1} parent=53 // loop_footer_branch
        %92 = sbr.rel target = $region56
      $region61: #{relation_learning_forward.1} parent=53 // loop_exit
        _
    $region54: #{relation_learning_forward.1} parent=13 // pred_fallthru
      _
    // Predicated region
    $region73: #{relation_learning_forward.1} parent=13 // pred_check
      _
    $region74: #{relation_learning_forward.1} parent=13 // pred_check_branch
      %125 = sbr.rel (0) target = $region76
    $region75: #{relation_learning_forward.1} parent=13 // pred_region
      %126 = vsyncadd %s82, 16
    $region76: #{relation_learning_forward.1} parent=13 // pred_fallthru
      _
  $region14: #{relation_learning_forward.1} parent=0 // loop_footer
    %s30 = sadd.s32 1, %s26
  $region15: #{relation_learning_forward.1} parent=0 // loop_footer_branch
    %25 = sbr.rel target = $region11
  $region16: #{relation_learning_forward.1} parent=0 // loop_exit
    _
  %v127 = vld [vmem:[%s2] sm:$0xff]
  %v128 = vld [vmem:[%s2 + $0x8] sm:$0xff]
  %v129 = vld [vmem:[%s2 + $0x10] sm:$0xff]
  %v130 = vld [vmem:[%s2 + $0x18] sm:$0xff]
  %v131 = vld [vmem:[%s2 + $0x20] sm:$0xff]
  %v132 = vld [vmem:[%s2 + $0x28] sm:$0xff]
  %v133 = vld [vmem:[%s2 + $0x30] sm:$0xff]
  %v134 = vld [vmem:[%s2 + $0x38] sm:$0xff]
  %v135 = vld [vmem:[%s2 + $0x40] sm:$0xff]
  %v136 = vld [vmem:[%s2 + $0x48] sm:$0xff]
  %v137 = vld [vmem:[%s2 + $0x50] sm:$0xff]
  %v138 = vld [vmem:[%s2 + $0x58] sm:$0xff]
  %v139 = vld [vmem:[%s2 + $0x60] sm:$0xff]
  %v140 = vld [vmem:[%s2 + $0x68] sm:$0xff]
  %v141 = vld [vmem:[%s2 + $0x70] sm:$0xff]
  %v142 = vld [vmem:[%s2 + $0x78] sm:$0xff]
  %v143 = vlaneseq
  %v144 = vand.u32 %v143, 127
  %145 = vset.pattern.permute.xlu0 0
  %146 = vperm.xlu0 %145, %v127
  %v147 = vpop.permute.xlu0 %146
  %148 = vset.pattern.permute.xlu0 0
  %149 = vperm.xlu0 %148, %v128
  %v150 = vpop.permute.xlu0 %149
  %151 = vset.pattern.permute.xlu0 0
  %152 = vperm.xlu0 %151, %v129
  %v153 = vpop.permute.xlu0 %152
  %154 = vset.pattern.permute.xlu0 0
  %155 = vperm.xlu0 %154, %v130
  %v156 = vpop.permute.xlu0 %155
  %157 = vset.pattern.permute.xlu0 0
  %158 = vperm.xlu0 %157, %v131
  %v159 = vpop.permute.xlu0 %158
  %160 = vset.pattern.permute.xlu0 0
  %161 = vperm.xlu0 %160, %v132
  %v162 = vpop.permute.xlu0 %161
  %163 = vset.pattern.permute.xlu0 0
  %164 = vperm.xlu0 %163, %v133
  %v165 = vpop.permute.xlu0 %164
  %166 = vset.pattern.permute.xlu0 0
  %167 = vperm.xlu0 %166, %v134
  %v168 = vpop.permute.xlu0 %167
  %169 = vset.pattern.permute.xlu0 0
  %170 = vperm.xlu0 %169, %v135
  %v171 = vpop.permute.xlu0 %170
  %172 = vset.pattern.permute.xlu0 0
  %173 = vperm.xlu0 %172, %v136
  %v174 = vpop.permute.xlu0 %173
  %175 = vset.pattern.permute.xlu0 0
  %176 = vperm.xlu0 %175, %v137
  %v177 = vpop.permute.xlu0 %176
  %178 = vset.pattern.permute.xlu0 0
  %179 = vperm.xlu0 %178, %v138
  %v180 = vpop.permute.xlu0 %179
  %181 = vset.pattern.permute.xlu0 0
  %182 = vperm.xlu0 %181, %v139
  %v183 = vpop.permute.xlu0 %182
  %184 = vset.pattern.permute.xlu0 0
  %185 = vperm.xlu0 %184, %v140
  %v186 = vpop.permute.xlu0 %185
  %187 = vset.pattern.permute.xlu0 0
  %188 = vperm.xlu0 %187, %v141
  %v189 = vpop.permute.xlu0 %188
  %190 = vset.pattern.permute.xlu0 0
  %191 = vperm.xlu0 %190, %v142
  %v192 = vpop.permute.xlu0 %191
  %vm193 = vcmp.eq.s32.totalorder %v147, %v144
  %vm194 = vcmp.eq.s32.totalorder %v150, %v144
  %vm195 = vcmp.eq.s32.totalorder %v153, %v144
  %vm196 = vcmp.eq.s32.totalorder %v156, %v144
  %vm197 = vcmp.eq.s32.totalorder %v159, %v144
  %vm198 = vcmp.eq.s32.totalorder %v162, %v144
  %vm199 = vcmp.eq.s32.totalorder %v165, %v144
  %vm200 = vcmp.eq.s32.totalorder %v168, %v144
  %vm201 = vcmp.eq.s32.totalorder %v171, %v144
  %vm202 = vcmp.eq.s32.totalorder %v174, %v144
  %vm203 = vcmp.eq.s32.totalorder %v177, %v144
  %vm204 = vcmp.eq.s32.totalorder %v180, %v144
  %vm205 = vcmp.eq.s32.totalorder %v183, %v144
  %vm206 = vcmp.eq.s32.totalorder %v186, %v144
  %vm207 = vcmp.eq.s32.totalorder %v189, %v144
  %vm208 = vcmp.eq.s32.totalorder %v192, %v144
  %v209 = vsel %vm193, 1, 0
  %v210 = vsel %vm194, 1, 0
  %v211 = vsel %vm195, 1, 0
  %v212 = vsel %vm196, 1, 0
  %v213 = vsel %vm197, 1, 0
  %v214 = vsel %vm198, 1, 0
  %v215 = vsel %vm199, 1, 0
  %v216 = vsel %vm200, 1, 0
  %v217 = vsel %vm201, 1, 0
  %v218 = vsel %vm202, 1, 0
  %v219 = vsel %vm203, 1, 0
  %v220 = vsel %vm204, 1, 0
  %v221 = vsel %vm205, 1, 0
  %v222 = vsel %vm206, 1, 0
  %v223 = vsel %vm207, 1, 0
  %v224 = vsel %vm208, 1, 0
  %v225 = vcvt.s32.f32 %v209
  %v226 = vcvt.s32.f32 %v210
  %v227 = vcvt.s32.f32 %v211
  %v228 = vcvt.s32.f32 %v212
  %v229 = vcvt.s32.f32 %v213
  %v230 = vcvt.s32.f32 %v214
  %v231 = vcvt.s32.f32 %v215
  %v232 = vcvt.s32.f32 %v216
  %v233 = vcvt.s32.f32 %v217
  %v234 = vcvt.s32.f32 %v218
  %v235 = vcvt.s32.f32 %v219
  %v236 = vcvt.s32.f32 %v220
  %v237 = vcvt.s32.f32 %v221
  %v238 = vcvt.s32.f32 %v222
  %v239 = vcvt.s32.f32 %v223
  %v240 = vcvt.s32.f32 %v224
  %v241 = vld [vmem:[%s3] sm:$0xff]
  %vm242 = vcmask 64512
  %v244 = vsel %vm242, %v225, 0
  %v247 = vsel %vm242, %v226, 0
  %v250 = vsel %vm242, %v227, 0
  %v253 = vsel %vm242, %v228, 0
  %v256 = vsel %vm242, %v229, 0
  %v259 = vsel %vm242, %v230, 0
  %v262 = vsel %vm242, %v231, 0
  %v265 = vsel %vm242, %v232, 0
  %v268 = vsel %vm242, %v233, 0
  %v271 = vsel %vm242, %v234, 0
  %v274 = vsel %vm242, %v235, 0
  %v277 = vsel %vm242, %v236, 0
  %v280 = vsel %vm242, %v237, 0
  %v283 = vsel %vm242, %v238, 0
  %v286 = vsel %vm242, %v239, 0
  %v289 = vsel %vm242, %v240, 0
  %291 = vmatprep.subr.mxu0 0.0
  %292 = vmatpush1.msra.mxu0 %v241
  %293 = vmatprep.subr.mxu0 0.0
  %294 = vmatpush1.msra.mxu0 0.0
  %295 = vmatprep.subr.mxu0 0.0
  %296 = vmatpush1.msra.mxu0 0.0
  %297 = vmatprep.subr.mxu0 0.0
  %298 = vmatpush1.msra.mxu0 0.0
  %299 = vmatprep.subr.mxu0 0.0
  %300 = vmatpush1.msra.mxu0 0.0
  %301 = vmatprep.subr.mxu0 0.0
  %302 = vmatpush1.msra.mxu0 0.0
  %303 = vmatprep.subr.mxu0 0.0
  %304 = vmatpush1.msra.mxu0 0.0
  %305 = vmatprep.subr.mxu0 0.0
  %306 = vmatpush1.msra.mxu0 0.0
  %307 = vmatprep.subr.mxu0 0.0
  %308 = vmatpush1.msra.mxu0 0.0
  %309 = vmatprep.subr.mxu0 0.0
  %310 = vmatpush1.msra.mxu0 0.0
  %311 = vmatprep.subr.mxu0 0.0
  %312 = vmatpush1.msra.mxu0 0.0
  %313 = vmatprep.subr.mxu0 0.0
  %314 = vmatpush1.msra.mxu0 0.0
  %315 = vmatprep.subr.mxu0 0.0
  %316 = vmatpush1.msra.mxu0 0.0
  %317 = vmatprep.subr.mxu0 0.0
  %318 = vmatpush1.msra.mxu0 0.0
  %319 = vmatprep.subr.mxu0 0.0
  %320 = vmatpush1.msra.mxu0 0.0
  %321 = vmatprep.subr.mxu0 0.0
  %322 = vmatpush1.msra.mxu0 0.0
  %323 = vmatprep.subr.mxu0 0.0
  %324 = vmatpush1.msra.mxu0 0.0
  %325 = vmatprep.subr.mxu0 0.0
  %326 = vmatpush1.msra.mxu0 0.0
  %327 = vmatprep.subr.mxu0 0.0
  %328 = vmatpush1.msra.mxu0 0.0
  %329 = vmatprep.subr.mxu0 0.0
  %330 = vmatpush1.msra.mxu0 0.0
  %331 = vmatprep.subr.mxu0 0.0
  %332 = vmatpush1.msra.mxu0 0.0
  %333 = vmatprep.subr.mxu0 0.0
  %334 = vmatpush1.msra.mxu0 0.0
  %335 = vmatprep.subr.mxu0 0.0
  %336 = vmatpush1.msra.mxu0 0.0
  %337 = vmatprep.subr.mxu0 0.0
  %338 = vmatpush1.msra.mxu0 0.0
  %339 = vmatprep.subr.mxu0 0.0
  %340 = vmatpush1.msra.mxu0 0.0
  %341 = vmatprep.subr.mxu0 0.0
  %342 = vmatpush1.msra.mxu0 0.0
  %343 = vmatprep.subr.mxu0 0.0
  %344 = vmatpush1.msra.mxu0 0.0
  %345 = vmatprep.subr.mxu0 0.0
  %346 = vmatpush1.msra.mxu0 0.0
  %347 = vmatprep.subr.mxu0 0.0
  %348 = vmatpush1.msra.mxu0 0.0
  %349 = vmatprep.subr.mxu0 0.0
  %350 = vmatpush1.msra.mxu0 0.0
  %351 = vmatprep.subr.mxu0 0.0
  %352 = vmatpush1.msra.mxu0 0.0
  %353 = vmatprep.subr.mxu0 0.0
  %354 = vmatpush1.msra.mxu0 0.0
  %355 = vmatprep.mubr.f32.mxu0 0.0
  %356 = vmatmul.mubr.f32.gmra.mrb[0].mxu0 %v244
  %v357 = vpop.f32.mrb[0].mxu0
  %v358 = vadd.f32 0.0, %v357
  %v359 = vpop.f32.mrb[0].mxu0
  %360 = vmatprep.mubr.f32.mxu0 0.0
  %361 = vmatmul.mubr.f32.gmra.mrb[0].mxu0 %v247
  %v362 = vpop.f32.mrb[0].mxu0
  %v363 = vadd.f32 0.0, %v362
  %v364 = vpop.f32.mrb[0].mxu0
  %365 = vmatprep.mubr.f32.mxu0 0.0
  %366 = vmatmul.mubr.f32.gmra.mrb[0].mxu0 %v250
  %v367 = vpop.f32.mrb[0].mxu0
  %v368 = vadd.f32 0.0, %v367
  %v369 = vpop.f32.mrb[0].mxu0
  %370 = vmatprep.mubr.f32.mxu0 0.0
  %371 = vmatmul.mubr.f32.gmra.mrb[0].mxu0 %v253
  %v372 = vpop.f32.mrb[0].mxu0
  %v373 = vadd.f32 0.0, %v372
  %v374 = vpop.f32.mrb[0].mxu0
  %375 = vmatprep.mubr.f32.mxu0 0.0
  %376 = vmatmul.mubr.f32.gmra.mrb[0].mxu0 %v256
  %v377 = vpop.f32.mrb[0].mxu0
  %v378 = vadd.f32 0.0, %v377
  %v379 = vpop.f32.mrb[0].mxu0
  %380 = vmatprep.mubr.f32.mxu0 0.0
  %381 = vmatmul.mubr.f32.gmra.mrb[0].mxu0 %v259
  %v382 = vpop.f32.mrb[0].mxu0
  %v383 = vadd.f32 0.0, %v382
  %v384 = vpop.f32.mrb[0].mxu0
  %385 = vmatprep.mubr.f32.mxu0 0.0
  %386 = vmatmul.mubr.f32.gmra.mrb[0].mxu0 %v262
  %v387 = vpop.f32.mrb[0].mxu0
  %v388 = vadd.f32 0.0, %v387
  %v389 = vpop.f32.mrb[0].mxu0
  %390 = vmatprep.mubr.f32.mxu0 0.0
  %391 = vmatmul.mubr.f32.gmra.mrb[0].mxu0 %v265
  %v392 = vpop.f32.mrb[0].mxu0
  %v393 = vadd.f32 0.0, %v392
  %v394 = vpop.f32.mrb[0].mxu0
  %395 = vmatprep.mubr.f32.mxu0 0.0
  %396 = vmatmul.mubr.f32.gmra.mrb[0].mxu0 %v268
  %v397 = vpop.f32.mrb[0].mxu0
  %v398 = vadd.f32 0.0, %v397
  %v399 = vpop.f32.mrb[0].mxu0
  %400 = vmatprep.mubr.f32.mxu0 0.0
  %401 = vmatmul.mubr.f32.gmra.mrb[0].mxu0 %v271
  %v402 = vpop.f32.mrb[0].mxu0
  %v403 = vadd.f32 0.0, %v402
  %v404 = vpop.f32.mrb[0].mxu0
  %405 = vmatprep.mubr.f32.mxu0 0.0
  %406 = vmatmul.mubr.f32.gmra.mrb[0].mxu0 %v274
  %v407 = vpop.f32.mrb[0].mxu0
  %v408 = vadd.f32 0.0, %v407
  %v409 = vpop.f32.mrb[0].mxu0
  %410 = vmatprep.mubr.f32.mxu0 0.0
  %411 = vmatmul.mubr.f32.gmra.mrb[0].mxu0 %v277
  %v412 = vpop.f32.mrb[0].mxu0
  %v413 = vadd.f32 0.0, %v412
  %v414 = vpop.f32.mrb[0].mxu0
  %415 = vmatprep.mubr.f32.mxu0 0.0
  %416 = vmatmul.mubr.f32.gmra.mrb[0].mxu0 %v280
  %v417 = vpop.f32.mrb[0].mxu0
  %v418 = vadd.f32 0.0, %v417
  %v419 = vpop.f32.mrb[0].mxu0
  %420 = vmatprep.mubr.f32.mxu0 0.0
  %421 = vmatmul.mubr.f32.gmra.mrb[0].mxu0 %v283
  %v422 = vpop.f32.mrb[0].mxu0
  %v423 = vadd.f32 0.0, %v422
  %v424 = vpop.f32.mrb[0].mxu0
  %425 = vmatprep.mubr.f32.mxu0 0.0
  %426 = vmatmul.mubr.f32.gmra.mrb[0].mxu0 %v286
  %v427 = vpop.f32.mrb[0].mxu0
  %v428 = vadd.f32 0.0, %v427
  %v429 = vpop.f32.mrb[0].mxu0
  %430 = vmatprep.mubr.f32.mxu0 0.0
  %431 = vmatmul.mubr.f32.gmra.mrb[0].mxu0 %v289
  %v432 = vpop.f32.mrb[0].mxu0
  %v433 = vadd.f32 0.0, %v432
  %v434 = vpop.f32.mrb[0].mxu0
  %435 = vdwg.mxu0
  loop: start=0, step=1, limit=128
  $region77: #{relation_learning_forward.1} parent=0 // loop_pre_header
    _
  $region78: #{relation_learning_forward.1} parent=0 // loop_header
    %s437 = sphi 0, %s441
    %p438 = scmp.ge.s32.totalorder %s437, 128
  $region79: #{relation_learning_forward.1} parent=0 // loop_header_branch
    %440 = sbr.rel (%p438) target = $region83
  $region80: #{relation_learning_forward.1} parent=0 // loop_body
    %443 = dma.done [#allocation4], 16
    %s444 = scalar_lea.sflag [#allocation4], 1
    %446 = dma.done %s444, 16
  $region81: #{relation_learning_forward.1} parent=0 // loop_footer
    %s441 = sadd.s32 1, %s437
  $region82: #{relation_learning_forward.1} parent=0 // loop_footer_branch
    %436 = sbr.rel target = $region78
  $region83: #{relation_learning_forward.1} parent=0 // loop_exit
    _
  %v447 = vld [vmem:[#allocation2] sm:$0xff]
  %v448 = vld [vmem:[#allocation2 + $0x8] sm:$0xff]
  %v449 = vld [vmem:[#allocation2 + $0x10] sm:$0xff]
  %v450 = vld [vmem:[#allocation2 + $0x18] sm:$0xff]
  %v451 = vld [vmem:[#allocation2 + $0x20] sm:$0xff]
  %v452 = vld [vmem:[#allocation2 + $0x28] sm:$0xff]
  %v453 = vld [vmem:[#allocation2 + $0x30] sm:$0xff]
  %v454 = vld [vmem:[#allocation2 + $0x38] sm:$0xff]
  %v455 = vld [vmem:[#allocation2 + $0x40] sm:$0xff]
  %v456 = vld [vmem:[#allocation2 + $0x48] sm:$0xff]
  %v457 = vld [vmem:[#allocation2 + $0x50] sm:$0xff]
  %v458 = vld [vmem:[#allocation2 + $0x58] sm:$0xff]
  %v459 = vld [vmem:[#allocation2 + $0x60] sm:$0xff]
  %v460 = vld [vmem:[#allocation2 + $0x68] sm:$0xff]
  %v461 = vld [vmem:[#allocation2 + $0x70] sm:$0xff]
  %v462 = vld [vmem:[#allocation2 + $0x78] sm:$0xff]
  %v463 = vld [vmem:[#allocation3] sm:$0xff]
  %v464 = vld [vmem:[#allocation3 + $0x8] sm:$0xff]
  %v465 = vld [vmem:[#allocation3 + $0x10] sm:$0xff]
  %v466 = vld [vmem:[#allocation3 + $0x18] sm:$0xff]
  %v467 = vld [vmem:[#allocation3 + $0x20] sm:$0xff]
  %v468 = vld [vmem:[#allocation3 + $0x28] sm:$0xff]
  %v469 = vld [vmem:[#allocation3 + $0x30] sm:$0xff]
  %v470 = vld [vmem:[#allocation3 + $0x38] sm:$0xff]
  %v471 = vld [vmem:[#allocation3 + $0x40] sm:$0xff]
  %v472 = vld [vmem:[#allocation3 + $0x48] sm:$0xff]
  %v473 = vld [vmem:[#allocation3 + $0x50] sm:$0xff]
  %v474 = vld [vmem:[#allocation3 + $0x58] sm:$0xff]
  %v475 = vld [vmem:[#allocation3 + $0x60] sm:$0xff]
  %v476 = vld [vmem:[#allocation3 + $0x68] sm:$0xff]
  %v477 = vld [vmem:[#allocation3 + $0x70] sm:$0xff]
  %v478 = vld [vmem:[#allocation3 + $0x78] sm:$0xff]
  %v479 = vadd.f32 %v447, %v358
  %v480 = vadd.f32 %v448, %v363
  %v481 = vadd.f32 %v449, %v368
  %v482 = vadd.f32 %v450, %v373
  %v483 = vadd.f32 %v451, %v378
  %v484 = vadd.f32 %v452, %v383
  %v485 = vadd.f32 %v453, %v388
  %v486 = vadd.f32 %v454, %v393
  %v487 = vadd.f32 %v455, %v398
  %v488 = vadd.f32 %v456, %v403
  %v489 = vadd.f32 %v457, %v408
  %v490 = vadd.f32 %v458, %v413
  %v491 = vadd.f32 %v459, %v418
  %v492 = vadd.f32 %v460, %v423
  %v493 = vadd.f32 %v461, %v428
  %v494 = vadd.f32 %v462, %v433
  %v495 = vsub.f32 %v479, %v463
  %v496 = vsub.f32 %v480, %v464
  %v497 = vsub.f32 %v481, %v465
  %v498 = vsub.f32 %v482, %v466
  %v499 = vsub.f32 %v483, %v467
  %v500 = vsub.f32 %v484, %v468
  %v501 = vsub.f32 %v485, %v469
  %v502 = vsub.f32 %v486, %v470
  %v503 = vsub.f32 %v487, %v471
  %v504 = vsub.f32 %v488, %v472
  %v505 = vsub.f32 %v489, %v473
  %v506 = vsub.f32 %v490, %v474
  %v507 = vsub.f32 %v491, %v475
  %v508 = vsub.f32 %v492, %v476
  %v509 = vsub.f32 %v493, %v477
  %v510 = vsub.f32 %v494, %v478
  %v511 = vand.u32 2147483647, %v495
  %v512 = vand.u32 2147483647, %v496
  %v513 = vand.u32 2147483647, %v497
  %v514 = vand.u32 2147483647, %v498
  %v515 = vand.u32 2147483647, %v499
  %v516 = vand.u32 2147483647, %v500
  %v517 = vand.u32 2147483647, %v501
  %v518 = vand.u32 2147483647, %v502
  %v519 = vand.u32 2147483647, %v503
  %v520 = vand.u32 2147483647, %v504
  %v521 = vand.u32 2147483647, %v505
  %v522 = vand.u32 2147483647, %v506
  %v523 = vand.u32 2147483647, %v507
  %v524 = vand.u32 2147483647, %v508
  %v525 = vand.u32 2147483647, %v509
  %v526 = vand.u32 2147483647, %v510
  %vm527 = vcmask 261120
  %v528 = vsel %vm527, %v511, 0.0
  %529 = vadd.xlane.f32.xlu0 %v528
  %v530 = vpop.xlane.xlu0 %529
  %v531 = vsel %vm527, %v512, 0.0
  %532 = vadd.xlane.f32.xlu0 %v531
  %v533 = vpop.xlane.xlu0 %532
  %v534 = vsel %vm527, %v513, 0.0
  %535 = vadd.xlane.f32.xlu0 %v534
  %v536 = vpop.xlane.xlu0 %535
  %v537 = vsel %vm527, %v514, 0.0
  %538 = vadd.xlane.f32.xlu0 %v537
  %v539 = vpop.xlane.xlu0 %538
  %v540 = vsel %vm527, %v515, 0.0
  %541 = vadd.xlane.f32.xlu0 %v540
  %v542 = vpop.xlane.xlu0 %541
  %v543 = vsel %vm527, %v516, 0.0
  %544 = vadd.xlane.f32.xlu0 %v543
  %v545 = vpop.xlane.xlu0 %544
  %v546 = vsel %vm527, %v517, 0.0
  %547 = vadd.xlane.f32.xlu0 %v546
  %v548 = vpop.xlane.xlu0 %547
  %v549 = vsel %vm527, %v518, 0.0
  %550 = vadd.xlane.f32.xlu0 %v549
  %v551 = vpop.xlane.xlu0 %550
  %v552 = vsel %vm527, %v519, 0.0
  %553 = vadd.xlane.f32.xlu0 %v552
  %v554 = vpop.xlane.xlu0 %553
  %v555 = vsel %vm527, %v520, 0.0
  %556 = vadd.xlane.f32.xlu0 %v555
  %v557 = vpop.xlane.xlu0 %556
  %v558 = vsel %vm527, %v521, 0.0
  %559 = vadd.xlane.f32.xlu0 %v558
  %v560 = vpop.xlane.xlu0 %559
  %v561 = vsel %vm527, %v522, 0.0
  %562 = vadd.xlane.f32.xlu0 %v561
  %v563 = vpop.xlane.xlu0 %562
  %v564 = vsel %vm527, %v523, 0.0
  %565 = vadd.xlane.f32.xlu0 %v564
  %v566 = vpop.xlane.xlu0 %565
  %v567 = vsel %vm527, %v524, 0.0
  %568 = vadd.xlane.f32.xlu0 %v567
  %v569 = vpop.xlane.xlu0 %568
  %v570 = vsel %vm527, %v525, 0.0
  %571 = vadd.xlane.f32.xlu0 %v570
  %v572 = vpop.xlane.xlu0 %571
  %v573 = vsel %vm527, %v526, 0.0
  %574 = vadd.xlane.f32.xlu0 %v573
  %v575 = vpop.xlane.xlu0 %574
  %v576 = vsub.f32 12.0, %v530
  %v577 = vsub.f32 12.0, %v533
  %v578 = vsub.f32 12.0, %v536
  %v579 = vsub.f32 12.0, %v539
  %v580 = vsub.f32 12.0, %v542
  %v581 = vsub.f32 12.0, %v545
  %v582 = vsub.f32 12.0, %v548
  %v583 = vsub.f32 12.0, %v551
  %v584 = vsub.f32 12.0, %v554
  %v585 = vsub.f32 12.0, %v557
  %v586 = vsub.f32 12.0, %v560
  %v587 = vsub.f32 12.0, %v563
  %v588 = vsub.f32 12.0, %v566
  %v589 = vsub.f32 12.0, %v569
  %v590 = vsub.f32 12.0, %v572
  %v591 = vsub.f32 12.0, %v575
  %v608 = vlaneseq
  %v609 = vshrl.u32 %v608, 7
  %v610 = vsub.s32 %v144, %v609
  %v611 = vrot.slane %v576, %v610
  %v612 = vadd.s32 %v144, 4294967288
  %v613 = vlaneseq
  %v614 = vshrl.u32 %v613, 7
  %v615 = vsub.s32 %v612, %v614
  %v616 = vrot.slane %v577, %v615
  %vm617 = vcmask 130112
  %v618 = vsel %vm617, %v616, %v611
  %v619 = vadd.s32 %v144, 4294967280
  %v620 = vlaneseq
  %v621 = vshrl.u32 %v620, 7
  %v622 = vsub.s32 %v619, %v621
  %v623 = vrot.slane %v578, %v622
  %vm624 = vcmask 195712
  %v625 = vsel %vm624, %v623, %v618
  %v626 = vadd.s32 %v144, 4294967272
  %v627 = vlaneseq
  %v628 = vshrl.u32 %v627, 7
  %v629 = vsub.s32 %v626, %v628
  %v630 = vrot.slane %v579, %v629
  %vm631 = vcmask 261312
  %v632 = vsel %vm631, %v630, %v625
  %v633 = vadd.s32 %v144, 4294967264
  %v634 = vlaneseq
  %v635 = vshrl.u32 %v634, 7
  %v636 = vsub.s32 %v633, %v635
  %v637 = vrot.slane %v580, %v636
  %vm638 = vcmask 326912
  %v639 = vsel %vm638, %v637, %v632
  %v640 = vadd.s32 %v144, 4294967256
  %v641 = vlaneseq
  %v642 = vshrl.u32 %v641, 7
  %v643 = vsub.s32 %v640, %v642
  %v644 = vrot.slane %v581, %v643
  %vm645 = vcmask 392512
  %v646 = vsel %vm645, %v644, %v639
  %v647 = vadd.s32 %v144, 4294967248
  %v648 = vlaneseq
  %v649 = vshrl.u32 %v648, 7
  %v650 = vsub.s32 %v647, %v649
  %v651 = vrot.slane %v582, %v650
  %vm652 = vcmask 458112
  %v653 = vsel %vm652, %v651, %v646
  %v654 = vadd.s32 %v144, 4294967240
  %v655 = vlaneseq
  %v656 = vshrl.u32 %v655, 7
  %v657 = vsub.s32 %v654, %v656
  %v658 = vrot.slane %v583, %v657
  %vm659 = vcmask 523712
  %v660 = vsel %vm659, %v658, %v653
  %v661 = vadd.s32 %v144, 4294967232
  %v662 = vlaneseq
  %v663 = vshrl.u32 %v662, 7
  %v664 = vsub.s32 %v661, %v663
  %v665 = vrot.slane %v584, %v664
  %vm666 = vcmask 589312
  %v667 = vsel %vm666, %v665, %v660
  %v668 = vadd.s32 %v144, 4294967224
  %v669 = vlaneseq
  %v670 = vshrl.u32 %v669, 7
  %v671 = vsub.s32 %v668, %v670
  %v672 = vrot.slane %v585, %v671
  %vm673 = vcmask 654912
  %v674 = vsel %vm673, %v672, %v667
  %v675 = vadd.s32 %v144, 4294967216
  %v676 = vlaneseq
  %v677 = vshrl.u32 %v676, 7
  %v678 = vsub.s32 %v675, %v677
  %v679 = vrot.slane %v586, %v678
  %vm680 = vcmask 720512
  %v681 = vsel %vm680, %v679, %v674
  %v682 = vadd.s32 %v144, 4294967208
  %v683 = vlaneseq
  %v684 = vshrl.u32 %v683, 7
  %v685 = vsub.s32 %v682, %v684
  %v686 = vrot.slane %v587, %v685
  %vm687 = vcmask 786112
  %v688 = vsel %vm687, %v686, %v681
  %v689 = vadd.s32 %v144, 4294967200
  %v690 = vlaneseq
  %v691 = vshrl.u32 %v690, 7
  %v692 = vsub.s32 %v689, %v691
  %v693 = vrot.slane %v588, %v692
  %vm694 = vcmask 851712
  %v695 = vsel %vm694, %v693, %v688
  %v696 = vadd.s32 %v144, 4294967192
  %v697 = vlaneseq
  %v698 = vshrl.u32 %v697, 7
  %v699 = vsub.s32 %v696, %v698
  %v700 = vrot.slane %v589, %v699
  %vm701 = vcmask 917312
  %v702 = vsel %vm701, %v700, %v695
  %v703 = vadd.s32 %v144, 4294967184
  %v704 = vlaneseq
  %v705 = vshrl.u32 %v704, 7
  %v706 = vsub.s32 %v703, %v705
  %v707 = vrot.slane %v590, %v706
  %vm708 = vcmask 982912
  %v709 = vsel %vm708, %v707, %v702
  %v710 = vadd.s32 %v144, 4294967176
  %v711 = vlaneseq
  %v712 = vshrl.u32 %v711, 7
  %v713 = vsub.s32 %v710, %v712
  %v714 = vrot.slane %v591, %v713
  %vm715 = vcmask 1048512
  %v716 = vsel %vm715, %v714, %v709
  %718 = vst [vmem:[%s5] sm:$0x1] %v716
  // Predicated region
  $region84: #{relation_learning_forward.1} parent=0 // pred_check
    _
  $region85: #{relation_learning_forward.1} parent=0 // pred_check_branch
    %720 = sbr.rel (0) target = $region87
  $region86: #{relation_learning_forward.1} parent=0 // pred_region
    _
  $region87: #{relation_learning_forward.1} parent=0 // pred_fallthru
    _
  // Predicated region
  $region88: #{relation_learning_forward.1} parent=0 // pred_check
    _
  $region89: #{relation_learning_forward.1} parent=0 // pred_check_branch
    %722 = sbr.rel (0) target = $region91
  $region90: #{relation_learning_forward.1} parent=0 // pred_region
    _
  $region91: #{relation_learning_forward.1} parent=0 // pred_fallthru
    _
  %723 = vsyncmov [#allocation4]
  %s724 = vpop.sfrf %723
  %p725 = scmp.eq.s32.totalorder %s724, 0
  %p726 = pneg %p725
  %728 = shalt.err (%p726)
  %s729 = scalar_lea.sflag [#allocation4], 1
  %730 = vsyncmov %s729
  %s731 = vpop.sfrf %730
  %p732 = scmp.eq.s32.totalorder %s731, 0
  %p733 = pneg %p732
  %735 = shalt.err (%p733)

</llo_original>
